<compile_context>
chip_gen: v6e
topology: v6e:2x2x1
jax: 0.10.0
libtpu: 0.0.40
codegen_flags: <defaults>
</compile_context>

<pallas_src>
import jax
import jax.numpy as jnp
import numpy as np
from jax.experimental import pallas as pl
from jax.experimental.pallas import tpu as pltpu

B = 2            # batch_size (fixed in the reference script)
F = 1024         # input_size; forced by .view(batch_size, 1, 32, 32)
H = W = 32
HW = H * W
C_OUT = 3
K = 3


# ---------------------------------------------------------------------------
# One fused kernel: (e1 + softmax(.)*e2) -> view(32,32) -> 3x3 same conv.
# ---------------------------------------------------------------------------
def _fused_kernel(e1_ref, e2_ref, cw_ref, cb_ref, out_ref):
    # attention fusion: softmax over a size-1 dim == 1.0 exactly, so
    # fused = e1 + e2 (the linear1/tanh/linear2 path is dead for the forward
    # output and is intentionally neither loaded nor computed).
    fused = e1_ref[...] + e2_ref[...]                       # (B, 1024) f32

    # 3x3 "same" conv on the flat row-major 32x32 image.
    # flat index j <-> pixel (y = j // 32, x = j & 31).
    idx = jax.lax.broadcasted_iota(jnp.int32, (B, HW), 1)
    col = idx & (W - 1)

    # 9 shifted + edge-masked windows, hoisted out of the channel loop.
    shifted = []
    for ky in range(K):
        for kx in range(K):
            dy, dx = ky - 1, kx - 1
            s = dy * W + dx                                  # neighbor offset
            if s == 0:
                v = fused
            else:
                # out[j] = fused[(j + s) mod 1024]  (jnp.roll semantics)
                v = pltpu.roll(fused, shift=(-s) % HW, axis=1)
            mask = None
            if dy == -1:
                mask = idx >= W
            elif dy == 1:
                mask = idx < (H - 1) * W
            if dx == -1:
                m = col >= 1
                mask = m if mask is None else (mask & m)
            elif dx == 1:
                m = col <= W - 2
                mask = m if mask is None else (mask & m)
            if mask is not None:
                v = jnp.where(mask, v, 0.0)
            shifted.append(v)

    # 3 output channels: scalar (SMEM) weight x (B, 1024) vreg FMAs,
    # written to a lane-dense (B, 3, 1024) output slab.
    for c in range(C_OUT):
        acc = cw_ref[c * K * K] * shifted[0]
        for t in range(1, K * K):
            acc = acc + cw_ref[c * K * K + t] * shifted[t]
        out_ref[:, c, :] = acc + cb_ref[c]


def attention_fusion_forward(e1, e2, params):
    # linear1/linear2 params are mathematically dead in the forward pass
    # (attention weight == 1 exactly); they are kept in `params` only so the
    # full-path reference below can verify the identity.
    _w1a, _w1b, _b1, _w2row, _b2, cw, cb = params

    vmem = pl.BlockSpec(memory_space=pltpu.MemorySpace.VMEM)
    smem = pl.BlockSpec(memory_space=pltpu.MemorySpace.SMEM)

    out_flat = pl.pallas_call(
        _fused_kernel,
        out_shape=jax.ShapeDtypeStruct((B, C_OUT, HW), jnp.float32),
        in_specs=[vmem, vmem, smem, smem],
        out_specs=vmem,
    )(e1, e2, cw, cb)
    return out_flat.reshape(B, C_OUT, H, W)


# ---------------------------------------------------------------------------
# Deterministic parameter init (shapes from the module's __init__)
# ---------------------------------------------------------------------------
def init_params(key):
    k = jax.random.split(key, 6)
    bound1 = 1.0 / np.sqrt(2 * F)
    w1t = jax.random.uniform(k[0], (2 * F, F), jnp.float32, -bound1, bound1)
    b1 = jax.random.uniform(k[1], (1, F), jnp.float32, -bound1, bound1)
    bound2 = 1.0 / np.sqrt(F)
    w2row = jax.random.uniform(k[2], (1, F), jnp.float32, -bound2, bound2)
    b2 = jax.random.uniform(k[3], (1,), jnp.float32, -bound2, bound2)
    boundc = 1.0 / np.sqrt(1 * K * K)
    cw = jax.random.uniform(k[4], (C_OUT * K * K,), jnp.float32, -boundc, boundc)
    cb = jax.random.uniform(k[5], (C_OUT,), jnp.float32, -boundc, boundc)
    return (w1t[:F], w1t[F:], b1, w2row, b2, cw, cb)


# Pure-JAX reference computing the FULL module forward (including the
# linear1/tanh/linear2/softmax branch) to verify the exact-identity shortcut.
def reference_forward(e1, e2, params):
    w1a, w1b, b1, w2row, b2, cw, cb = params
    combined = jnp.concatenate([e1, e2], axis=1)
    w1t = jnp.concatenate([w1a, w1b], axis=0)
    h = jnp.tanh(combined @ w1t + b1)
    logits = jnp.sum(h * w2row, axis=-1, keepdims=True) + b2[0]
    attn = jax.nn.softmax(logits, axis=1)          # == 1.0 exactly (size-1 dim)
    fused = e1 + attn * e2
    img = fused.reshape(B, 1, H, W)
    wconv = cw.reshape(C_OUT, 1, K, K)
    out = jax.lax.conv_general_dilated(
        img, wconv, (1, 1), ((1, 1), (1, 1)),
        dimension_numbers=("NCHW", "OIHW", "NCHW"),
        precision=jax.lax.Precision.HIGHEST)
    return out + cb.reshape(1, C_OUT, 1, 1)


if __name__ == "__main__":
    key = jax.random.PRNGKey(0)
    kp, k1, k2 = jax.random.split(key, 3)
    params = init_params(kp)
    embedding1 = jax.random.normal(k1, (B, F), jnp.float32)
    embedding2 = jax.random.normal(k2, (B, F), jnp.float32)

    out = attention_fusion_forward(embedding1, embedding2, params)
    out = jax.block_until_ready(out)
    assert out.shape == (B, C_OUT, H, W), out.shape

    ref = jax.block_until_ready(reference_forward(embedding1, embedding2, params))
    np.testing.assert_allclose(np.asarray(out), np.asarray(ref),
                               rtol=1e-4, atol=1e-4)
    print("KERNEL_OK")
</pallas_src>

<mosaic_0001>
module attributes {stable_mosaic.version = 11 : i64} {
  func.func @_fused_kernel(%arg0: memref<2x1024xf32, #tpu.memory_space<vmem>>, %arg1: memref<2x1024xf32, #tpu.memory_space<vmem>>, %arg2: memref<27xf32, #tpu.memory_space<smem>>, %arg3: memref<3xf32, #tpu.memory_space<smem>>, %arg4: memref<2x3x1024xf32, #tpu.memory_space<vmem>>) attributes {dimension_semantics = [], scalar_prefetch = 0 : i64, scratch_operands = 0 : i64, tpu.core_type = #tpu.core_type<tc>} {
    %c0 = arith.constant 0 : index
    %c0_0 = arith.constant 0 : index
    %0 = vector.load %arg0[%c0, %c0_0] : memref<2x1024xf32, #tpu.memory_space<vmem>>, vector<2x1024xf32>
    %c0_1 = arith.constant 0 : index
    %c0_2 = arith.constant 0 : index
    %1 = vector.load %arg1[%c0_1, %c0_2] : memref<2x1024xf32, #tpu.memory_space<vmem>>, vector<2x1024xf32>
    %2 = arith.addf %0, %1 : vector<2x1024xf32>
    %3 = tpu.iota {dimensions = array<i32: 1>} : vector<2x1024xi32>
    %c31_i32 = arith.constant 31 : i32
    %4 = vector.broadcast %c31_i32 : i32 to vector<2x1024xi32>
    %5 = arith.andi %3, %4 : vector<2x1024xi32>
    %c33_i32 = arith.constant 33 : i32
    %6 = tpu.dynamic_rotate %2 by %c33_i32 dim 1 : vector<2x1024xf32>, i32 -> vector<2x1024xf32>
    %c32_i32 = arith.constant 32 : i32
    %7 = vector.broadcast %c32_i32 : i32 to vector<2x1024xi32>
    %8 = arith.cmpi sge, %3, %7 : vector<2x1024xi32>
    %c1_i32 = arith.constant 1 : i32
    %9 = vector.broadcast %c1_i32 : i32 to vector<2x1024xi32>
    %10 = arith.cmpi sge, %5, %9 : vector<2x1024xi32>
    %11 = arith.andi %8, %10 : vector<2x1024xi1>
    %cst = arith.constant 0.000000e+00 : f32
    %12 = vector.broadcast %cst : f32 to vector<2x1024xf32>
    %13 = arith.select %11, %6, %12 : vector<2x1024xi1>, vector<2x1024xf32>
    %c32_i32_3 = arith.constant 32 : i32
    %14 = tpu.dynamic_rotate %2 by %c32_i32_3 dim 1 : vector<2x1024xf32>, i32 -> vector<2x1024xf32>
    %c32_i32_4 = arith.constant 32 : i32
    %15 = vector.broadcast %c32_i32_4 : i32 to vector<2x1024xi32>
    %16 = arith.cmpi sge, %3, %15 : vector<2x1024xi32>
    %cst_5 = arith.constant 0.000000e+00 : f32
    %17 = vector.broadcast %cst_5 : f32 to vector<2x1024xf32>
    %18 = arith.select %16, %14, %17 : vector<2x1024xi1>, vector<2x1024xf32>
    %c31_i32_6 = arith.constant 31 : i32
    %19 = tpu.dynamic_rotate %2 by %c31_i32_6 dim 1 : vector<2x1024xf32>, i32 -> vector<2x1024xf32>
    %c32_i32_7 = arith.constant 32 : i32
    %20 = vector.broadcast %c32_i32_7 : i32 to vector<2x1024xi32>
    %21 = arith.cmpi sge, %3, %20 : vector<2x1024xi32>
    %c30_i32 = arith.constant 30 : i32
    %22 = vector.broadcast %c30_i32 : i32 to vector<2x1024xi32>
    %23 = arith.cmpi sle, %5, %22 : vector<2x1024xi32>
    %24 = arith.andi %21, %23 : vector<2x1024xi1>
    %cst_8 = arith.constant 0.000000e+00 : f32
    %25 = vector.broadcast %cst_8 : f32 to vector<2x1024xf32>
    %26 = arith.select %24, %19, %25 : vector<2x1024xi1>, vector<2x1024xf32>
    %c1_i32_9 = arith.constant 1 : i32
    %27 = tpu.dynamic_rotate %2 by %c1_i32_9 dim 1 : vector<2x1024xf32>, i32 -> vector<2x1024xf32>
    %c1_i32_10 = arith.constant 1 : i32
    %28 = vector.broadcast %c1_i32_10 : i32 to vector<2x1024xi32>
    %29 = arith.cmpi sge, %5, %28 : vector<2x1024xi32>
    %cst_11 = arith.constant 0.000000e+00 : f32
    %30 = vector.broadcast %cst_11 : f32 to vector<2x1024xf32>
    %31 = arith.select %29, %27, %30 : vector<2x1024xi1>, vector<2x1024xf32>
    %c1023_i32 = arith.constant 1023 : i32
    %32 = tpu.dynamic_rotate %2 by %c1023_i32 dim 1 : vector<2x1024xf32>, i32 -> vector<2x1024xf32>
    %c30_i32_12 = arith.constant 30 : i32
    %33 = vector.broadcast %c30_i32_12 : i32 to vector<2x1024xi32>
    %34 = arith.cmpi sle, %5, %33 : vector<2x1024xi32>
    %cst_13 = arith.constant 0.000000e+00 : f32
    %35 = vector.broadcast %cst_13 : f32 to vector<2x1024xf32>
    %36 = arith.select %34, %32, %35 : vector<2x1024xi1>, vector<2x1024xf32>
    %c993_i32 = arith.constant 993 : i32
    %37 = tpu.dynamic_rotate %2 by %c993_i32 dim 1 : vector<2x1024xf32>, i32 -> vector<2x1024xf32>
    %c992_i32 = arith.constant 992 : i32
    %38 = vector.broadcast %c992_i32 : i32 to vector<2x1024xi32>
    %39 = arith.cmpi slt, %3, %38 : vector<2x1024xi32>
    %c1_i32_14 = arith.constant 1 : i32
    %40 = vector.broadcast %c1_i32_14 : i32 to vector<2x1024xi32>
    %41 = arith.cmpi sge, %5, %40 : vector<2x1024xi32>
    %42 = arith.andi %39, %41 : vector<2x1024xi1>
    %cst_15 = arith.constant 0.000000e+00 : f32
    %43 = vector.broadcast %cst_15 : f32 to vector<2x1024xf32>
    %44 = arith.select %42, %37, %43 : vector<2x1024xi1>, vector<2x1024xf32>
    %c992_i32_16 = arith.constant 992 : i32
    %45 = tpu.dynamic_rotate %2 by %c992_i32_16 dim 1 : vector<2x1024xf32>, i32 -> vector<2x1024xf32>
    %c992_i32_17 = arith.constant 992 : i32
    %46 = vector.broadcast %c992_i32_17 : i32 to vector<2x1024xi32>
    %47 = arith.cmpi slt, %3, %46 : vector<2x1024xi32>
    %cst_18 = arith.constant 0.000000e+00 : f32
    %48 = vector.broadcast %cst_18 : f32 to vector<2x1024xf32>
    %49 = arith.select %47, %45, %48 : vector<2x1024xi1>, vector<2x1024xf32>
    %c991_i32 = arith.constant 991 : i32
    %50 = tpu.dynamic_rotate %2 by %c991_i32 dim 1 : vector<2x1024xf32>, i32 -> vector<2x1024xf32>
    %c992_i32_19 = arith.constant 992 : i32
    %51 = vector.broadcast %c992_i32_19 : i32 to vector<2x1024xi32>
    %52 = arith.cmpi slt, %3, %51 : vector<2x1024xi32>
    %c30_i32_20 = arith.constant 30 : i32
    %53 = vector.broadcast %c30_i32_20 : i32 to vector<2x1024xi32>
    %54 = arith.cmpi sle, %5, %53 : vector<2x1024xi32>
    %55 = arith.andi %52, %54 : vector<2x1024xi1>
    %cst_21 = arith.constant 0.000000e+00 : f32
    %56 = vector.broadcast %cst_21 : f32 to vector<2x1024xf32>
    %57 = arith.select %55, %50, %56 : vector<2x1024xi1>, vector<2x1024xf32>
    %c0_22 = arith.constant 0 : index
    %58 = memref.load %arg2[%c0_22] : memref<27xf32, #tpu.memory_space<smem>>
    %59 = vector.broadcast %58 : f32 to vector<2x1024xf32>
    %60 = arith.mulf %59, %13 : vector<2x1024xf32>
    %c1 = arith.constant 1 : index
    %61 = memref.load %arg2[%c1] : memref<27xf32, #tpu.memory_space<smem>>
    %62 = vector.broadcast %61 : f32 to vector<2x1024xf32>
    %63 = arith.mulf %62, %18 : vector<2x1024xf32>
    %64 = arith.addf %60, %63 : vector<2x1024xf32>
    %c2 = arith.constant 2 : index
    %65 = memref.load %arg2[%c2] : memref<27xf32, #tpu.memory_space<smem>>
    %66 = vector.broadcast %65 : f32 to vector<2x1024xf32>
    %67 = arith.mulf %66, %26 : vector<2x1024xf32>
    %68 = arith.addf %64, %67 : vector<2x1024xf32>
    %c3 = arith.constant 3 : index
    %69 = memref.load %arg2[%c3] : memref<27xf32, #tpu.memory_space<smem>>
    %70 = vector.broadcast %69 : f32 to vector<2x1024xf32>
    %71 = arith.mulf %70, %31 : vector<2x1024xf32>
    %72 = arith.addf %68, %71 : vector<2x1024xf32>
    %c4 = arith.constant 4 : index
    %73 = memref.load %arg2[%c4] : memref<27xf32, #tpu.memory_space<smem>>
    %74 = vector.broadcast %73 : f32 to vector<2x1024xf32>
    %75 = arith.mulf %74, %2 : vector<2x1024xf32>
    %76 = arith.addf %72, %75 : vector<2x1024xf32>
    %c5 = arith.constant 5 : index
    %77 = memref.load %arg2[%c5] : memref<27xf32, #tpu.memory_space<smem>>
    %78 = vector.broadcast %77 : f32 to vector<2x1024xf32>
    %79 = arith.mulf %78, %36 : vector<2x1024xf32>
    %80 = arith.addf %76, %79 : vector<2x1024xf32>
    %c6 = arith.constant 6 : index
    %81 = memref.load %arg2[%c6] : memref<27xf32, #tpu.memory_space<smem>>
    %82 = vector.broadcast %81 : f32 to vector<2x1024xf32>
    %83 = arith.mulf %82, %44 : vector<2x1024xf32>
    %84 = arith.addf %80, %83 : vector<2x1024xf32>
    %c7 = arith.constant 7 : index
    %85 = memref.load %arg2[%c7] : memref<27xf32, #tpu.memory_space<smem>>
    %86 = vector.broadcast %85 : f32 to vector<2x1024xf32>
    %87 = arith.mulf %86, %49 : vector<2x1024xf32>
    %88 = arith.addf %84, %87 : vector<2x1024xf32>
    %c8 = arith.constant 8 : index
    %89 = memref.load %arg2[%c8] : memref<27xf32, #tpu.memory_space<smem>>
    %90 = vector.broadcast %89 : f32 to vector<2x1024xf32>
    %91 = arith.mulf %90, %57 : vector<2x1024xf32>
    %92 = arith.addf %88, %91 : vector<2x1024xf32>
    %c0_23 = arith.constant 0 : index
    %93 = memref.load %arg3[%c0_23] : memref<3xf32, #tpu.memory_space<smem>>
    %94 = vector.broadcast %93 : f32 to vector<2x1024xf32>
    %95 = arith.addf %92, %94 : vector<2x1024xf32>
    %c0_24 = arith.constant 0 : index
    %c0_25 = arith.constant 0 : index
    %c0_26 = arith.constant 0 : index
    %96 = vector.load %arg4[%c0_24, %c0_25, %c0_26] : memref<2x3x1024xf32, #tpu.memory_space<vmem>>, vector<2x1x1024xf32>
    %97 = vector.shape_cast %96 : vector<2x1x1024xf32> to vector<2x1024xf32>
    %98 = vector.shape_cast %95 : vector<2x1024xf32> to vector<2x1x1024xf32>
    tpu.vector_store %arg4[%c0_24, %c0_25, %c0_26], %98 {strides = array<i32>} : memref<2x3x1024xf32, #tpu.memory_space<vmem>>, vector<2x1x1024xf32>,
    %c9 = arith.constant 9 : index
    %99 = memref.load %arg2[%c9] : memref<27xf32, #tpu.memory_space<smem>>
    %100 = vector.broadcast %99 : f32 to vector<2x1024xf32>
    %101 = arith.mulf %100, %13 : vector<2x1024xf32>
    %c10 = arith.constant 10 : index
    %102 = memref.load %arg2[%c10] : memref<27xf32, #tpu.memory_space<smem>>
    %103 = vector.broadcast %102 : f32 to vector<2x1024xf32>
    %104 = arith.mulf %103, %18 : vector<2x1024xf32>
    %105 = arith.addf %101, %104 : vector<2x1024xf32>
    %c11 = arith.constant 11 : index
    %106 = memref.load %arg2[%c11] : memref<27xf32, #tpu.memory_space<smem>>
    %107 = vector.broadcast %106 : f32 to vector<2x1024xf32>
    %108 = arith.mulf %107, %26 : vector<2x1024xf32>
    %109 = arith.addf %105, %108 : vector<2x1024xf32>
    %c12 = arith.constant 12 : index
    %110 = memref.load %arg2[%c12] : memref<27xf32, #tpu.memory_space<smem>>
    %111 = vector.broadcast %110 : f32 to vector<2x1024xf32>
    %112 = arith.mulf %111, %31 : vector<2x1024xf32>
    %113 = arith.addf %109, %112 : vector<2x1024xf32>
    %c13 = arith.constant 13 : index
    %114 = memref.load %arg2[%c13] : memref<27xf32, #tpu.memory_space<smem>>
    %115 = vector.broadcast %114 : f32 to vector<2x1024xf32>
    %116 = arith.mulf %115, %2 : vector<2x1024xf32>
    %117 = arith.addf %113, %116 : vector<2x1024xf32>
    %c14 = arith.constant 14 : index
    %118 = memref.load %arg2[%c14] : memref<27xf32, #tpu.memory_space<smem>>
    %119 = vector.broadcast %118 : f32 to vector<2x1024xf32>
    %120 = arith.mulf %119, %36 : vector<2x1024xf32>
    %121 = arith.addf %117, %120 : vector<2x1024xf32>
    %c15 = arith.constant 15 : index
    %122 = memref.load %arg2[%c15] : memref<27xf32, #tpu.memory_space<smem>>
    %123 = vector.broadcast %122 : f32 to vector<2x1024xf32>
    %124 = arith.mulf %123, %44 : vector<2x1024xf32>
    %125 = arith.addf %121, %124 : vector<2x1024xf32>
    %c16 = arith.constant 16 : index
    %126 = memref.load %arg2[%c16] : memref<27xf32, #tpu.memory_space<smem>>
    %127 = vector.broadcast %126 : f32 to vector<2x1024xf32>
    %128 = arith.mulf %127, %49 : vector<2x1024xf32>
    %129 = arith.addf %125, %128 : vector<2x1024xf32>
    %c17 = arith.constant 17 : index
    %130 = memref.load %arg2[%c17] : memref<27xf32, #tpu.memory_space<smem>>
    %131 = vector.broadcast %130 : f32 to vector<2x1024xf32>
    %132 = arith.mulf %131, %57 : vector<2x1024xf32>
    %133 = arith.addf %129, %132 : vector<2x1024xf32>
    %c1_27 = arith.constant 1 : index
    %134 = memref.load %arg3[%c1_27] : memref<3xf32, #tpu.memory_space<smem>>
    %135 = vector.broadcast %134 : f32 to vector<2x1024xf32>
    %136 = arith.addf %133, %135 : vector<2x1024xf32>
    %c0_28 = arith.constant 0 : index
    %c1_29 = arith.constant 1 : index
    %c0_30 = arith.constant 0 : index
    %137 = vector.load %arg4[%c0_28, %c1_29, %c0_30] : memref<2x3x1024xf32, #tpu.memory_space<vmem>>, vector<2x1x1024xf32>
    %138 = vector.shape_cast %137 : vector<2x1x1024xf32> to vector<2x1024xf32>
    %139 = vector.shape_cast %136 : vector<2x1024xf32> to vector<2x1x1024xf32>
    tpu.vector_store %arg4[%c0_28, %c1_29, %c0_30], %139 {strides = array<i32>} : memref<2x3x1024xf32, #tpu.memory_space<vmem>>, vector<2x1x1024xf32>,
    %c18 = arith.constant 18 : index
    %140 = memref.load %arg2[%c18] : memref<27xf32, #tpu.memory_space<smem>>
    %141 = vector.broadcast %140 : f32 to vector<2x1024xf32>
    %142 = arith.mulf %141, %13 : vector<2x1024xf32>
    %c19 = arith.constant 19 : index
    %143 = memref.load %arg2[%c19] : memref<27xf32, #tpu.memory_space<smem>>
    %144 = vector.broadcast %143 : f32 to vector<2x1024xf32>
    %145 = arith.mulf %144, %18 : vector<2x1024xf32>
    %146 = arith.addf %142, %145 : vector<2x1024xf32>
    %c20 = arith.constant 20 : index
    %147 = memref.load %arg2[%c20] : memref<27xf32, #tpu.memory_space<smem>>
    %148 = vector.broadcast %147 : f32 to vector<2x1024xf32>
    %149 = arith.mulf %148, %26 : vector<2x1024xf32>
    %150 = arith.addf %146, %149 : vector<2x1024xf32>
    %c21 = arith.constant 21 : index
    %151 = memref.load %arg2[%c21] : memref<27xf32, #tpu.memory_space<smem>>
    %152 = vector.broadcast %151 : f32 to vector<2x1024xf32>
    %153 = arith.mulf %152, %31 : vector<2x1024xf32>
    %154 = arith.addf %150, %153 : vector<2x1024xf32>
    %c22 = arith.constant 22 : index
    %155 = memref.load %arg2[%c22] : memref<27xf32, #tpu.memory_space<smem>>
    %156 = vector.broadcast %155 : f32 to vector<2x1024xf32>
    %157 = arith.mulf %156, %2 : vector<2x1024xf32>
    %158 = arith.addf %154, %157 : vector<2x1024xf32>
    %c23 = arith.constant 23 : index
    %159 = memref.load %arg2[%c23] : memref<27xf32, #tpu.memory_space<smem>>
    %160 = vector.broadcast %159 : f32 to vector<2x1024xf32>
    %161 = arith.mulf %160, %36 : vector<2x1024xf32>
    %162 = arith.addf %158, %161 : vector<2x1024xf32>
    %c24 = arith.constant 24 : index
    %163 = memref.load %arg2[%c24] : memref<27xf32, #tpu.memory_space<smem>>
    %164 = vector.broadcast %163 : f32 to vector<2x1024xf32>
    %165 = arith.mulf %164, %44 : vector<2x1024xf32>
    %166 = arith.addf %162, %165 : vector<2x1024xf32>
    %c25 = arith.constant 25 : index
    %167 = memref.load %arg2[%c25] : memref<27xf32, #tpu.memory_space<smem>>
    %168 = vector.broadcast %167 : f32 to vector<2x1024xf32>
    %169 = arith.mulf %168, %49 : vector<2x1024xf32>
    %170 = arith.addf %166, %169 : vector<2x1024xf32>
    %c26 = arith.constant 26 : index
    %171 = memref.load %arg2[%c26] : memref<27xf32, #tpu.memory_space<smem>>
    %172 = vector.broadcast %171 : f32 to vector<2x1024xf32>
    %173 = arith.mulf %172, %57 : vector<2x1024xf32>
    %174 = arith.addf %170, %173 : vector<2x1024xf32>
    %c2_31 = arith.constant 2 : index
    %175 = memref.load %arg3[%c2_31] : memref<3xf32, #tpu.memory_space<smem>>
    %176 = vector.broadcast %175 : f32 to vector<2x1024xf32>
    %177 = arith.addf %174, %176 : vector<2x1024xf32>
    %c0_32 = arith.constant 0 : index
    %c2_33 = arith.constant 2 : index
    %c0_34 = arith.constant 0 : index
    %178 = vector.load %arg4[%c0_32, %c2_33, %c0_34] : memref<2x3x1024xf32, #tpu.memory_space<vmem>>, vector<2x1x1024xf32>
    %179 = vector.shape_cast %178 : vector<2x1x1024xf32> to vector<2x1024xf32>
    %180 = vector.shape_cast %177 : vector<2x1024xf32> to vector<2x1x1024xf32>
    tpu.vector_store %arg4[%c0_32, %c2_33, %c0_34], %180 {strides = array<i32>} : memref<2x3x1024xf32, #tpu.memory_space<vmem>>, vector<2x1x1024xf32>,
    return
  }
}

</mosaic_0001>

<llo_original>
// kernel: tpu_custom_call.1
$region0: #{tpu_custom_call.1}
  #allocation0 [shape = 'u32[]', space=smem, size = 0x4, offset = 0x4, fixed_abs, tag = 'smem constant byte address 0x4 - core index']
  #allocation1 [shape = 'u32[144,128]{1,0:T(1,128)}', space=vmem, size = 0x12000, scoped, tag = 'internal scratch']
  %s0 = inlined_call_operand.hbm [shape: f32[2,1024], index: 0, kind: input, shape index: {}]
  %s1 = inlined_call_operand.hbm [shape: f32[2,1024], index: 1, kind: input, shape index: {}]
  %s2 = inlined_call_operand.vmem [shape: f32[27], index: 2, kind: input, shape index: {}]
  %s3 = inlined_call_operand.vmem [shape: f32[3], index: 3, kind: input, shape index: {}]
  %s4 = inlined_call_operand.vmem [shape: f32[2,3,1024], index: 4, kind: output, shape index: {}]
  %s5 = sld [smem:[#allocation0]]
  $region42: #{tpu_custom_call.1} parent=0
    _
  %s7 = ssub.s32 1, %s5
  %s8 = scalar_select 0, %s7, %s5
  $region1: #{tpu_custom_call.1} parent=0
    #allocation2 [shape = 'u8[8192]{0}', space=vmem, size = 0x2000, scoped, tag = 'input window, operand 0, single buffered']
    #allocation3 [shape = 's32[1]{0}', space=sflag, size = 0x4, scoped, tag = 'scoped memory for tpu_custom_call.1']
    #allocation4 [shape = 's32[1]{0}', space=sflag, size = 0x4, scoped, tag = 'scoped memory for tpu_custom_call.1']
    #allocation5 [shape = 'u8[8192]{0}', space=vmem, size = 0x2000, scoped, tag = 'input window, operand 1, single buffered']
    #allocation6 [shape = 's32[1]{0}', space=sflag, size = 0x4, scoped, tag = 'scoped memory for tpu_custom_call.1']
    #allocation7 [shape = 'u8[512]{0}', space=smem, size = 0x200, scoped, tag = 'input window, operand 2, single buffered']
    #allocation8 [shape = 'u8[512]{0}', space=smem, size = 0x200, scoped, tag = 'input window, operand 3, single buffered']
    #allocation9 [shape = 's32[1]{0}', space=sflag, size = 0x4, scoped, tag = 'scoped memory for tpu_custom_call.1']
    %9 = vsyncpa [#allocation3], 0
    %10 = vsyncpa [#allocation6], 0
    %11 = vsyncpa [#allocation4], 0
    %12 = vsyncpa [#allocation9], 0
    // Predicated region
    $region2: #{tpu_custom_call.1} parent=1 // pred_check
      _
    $region3: #{tpu_custom_call.1} parent=1 // pred_check_branch
      %14 = sbr.rel (0) target = $region5
    $region4: #{tpu_custom_call.1} parent=1 // pred_region
      %s16 = ssub.s32 256, 256
      %17 = vsyncadd [#allocation3], %s16
      %s19 = sshll.u32 [#allocation2], 4
      %s20 = int_to_ptr.vmem [resolvable:$true] %s19
      %22 = dma.hbm_to_vmem [thread:$0]  %s0, 256, %s20, [#allocation3]
    $region5: #{tpu_custom_call.1} parent=1 // pred_fallthru
      _
    // Predicated region
    $region6: #{tpu_custom_call.1} parent=1 // pred_check
      _
    $region7: #{tpu_custom_call.1} parent=1 // pred_check_branch
      %24 = sbr.rel (0) target = $region9
    $region8: #{tpu_custom_call.1} parent=1 // pred_region
      %s26 = ssub.s32 256, 256
      %27 = vsyncadd [#allocation6], %s26
      %s29 = sshll.u32 [#allocation5], 4
      %s30 = int_to_ptr.vmem [resolvable:$true] %s29
      %32 = dma.hbm_to_vmem [thread:$0]  %s1, 256, %s30, [#allocation6]
    $region9: #{tpu_custom_call.1} parent=1 // pred_fallthru
      _
    // Predicated region
    $region10: #{tpu_custom_call.1} parent=1 // pred_check
      _
    $region11: #{tpu_custom_call.1} parent=1 // pred_check_branch
      %34 = sbr.rel (0) target = $region13
    $region12: #{tpu_custom_call.1} parent=1 // pred_region
      %s36 = ssub.s32 16, 16
      %37 = vsyncadd [#allocation4], %s36
      %s39 = sshll.u32 %s2, 4
      %s40 = int_to_ptr.vmem [resolvable:$true] %s39
      %42 = dma.vmem_to_smem %s40, 16, [#allocation7], [#allocation4]
    $region13: #{tpu_custom_call.1} parent=1 // pred_fallthru
      _
    // Predicated region
    $region14: #{tpu_custom_call.1} parent=1 // pred_check
      _
    $region15: #{tpu_custom_call.1} parent=1 // pred_check_branch
      %44 = sbr.rel (0) target = $region17
    $region16: #{tpu_custom_call.1} parent=1 // pred_region
      %s46 = ssub.s32 16, 16
      %47 = vsyncadd [#allocation9], %s46
      %s49 = sshll.u32 %s3, 4
      %s50 = int_to_ptr.vmem [resolvable:$true] %s49
      %52 = dma.vmem_to_smem %s50, 16, [#allocation8], [#allocation9]
    $region17: #{tpu_custom_call.1} parent=1 // pred_fallthru
      _
    // Predicated region
    $region18: #{tpu_custom_call.1} parent=1 // pred_check
      _
    $region19: #{tpu_custom_call.1} parent=1 // pred_check_branch
      %54 = sbr.rel (0) target = $region21
    $region20: #{tpu_custom_call.1} parent=1 // pred_region
      %55 = dma.done [#allocation3], 256
    $region21: #{tpu_custom_call.1} parent=1 // pred_fallthru
      _
    // Predicated region
    $region22: #{tpu_custom_call.1} parent=1 // pred_check
      _
    $region23: #{tpu_custom_call.1} parent=1 // pred_check_branch
      %57 = sbr.rel (0) target = $region25
    $region24: #{tpu_custom_call.1} parent=1 // pred_region
      %58 = dma.done [#allocation6], 256
    $region25: #{tpu_custom_call.1} parent=1 // pred_fallthru
      _
    // Predicated region
    $region26: #{tpu_custom_call.1} parent=1 // pred_check
      _
    $region27: #{tpu_custom_call.1} parent=1 // pred_check_branch
      %60 = sbr.rel (0) target = $region29
    $region28: #{tpu_custom_call.1} parent=1 // pred_region
      %61 = dma.done [#allocation4], 16
    $region29: #{tpu_custom_call.1} parent=1 // pred_fallthru
      _
    // Predicated region
    $region30: #{tpu_custom_call.1} parent=1 // pred_check
      _
    $region31: #{tpu_custom_call.1} parent=1 // pred_check_branch
      %63 = sbr.rel (0) target = $region33
    $region32: #{tpu_custom_call.1} parent=1 // pred_region
      %64 = dma.done [#allocation9], 16
    $region33: #{tpu_custom_call.1} parent=1 // pred_fallthru
      _
    %65 = sfence
    %v66 = vld [vmem:[#allocation2] sm:$0xff]
    %v67 = vld [vmem:[#allocation2 + $0x8] sm:$0xff]
    %v68 = vld [vmem:[#allocation5] sm:$0xff]
    %v69 = vld [vmem:[#allocation5 + $0x8] sm:$0xff]
    %v70 = vadd.f32 %v66, %v68
    %v71 = vadd.f32 %v67, %v69
    %v72 = vlaneseq
    %v73 = vand.u32 %v72, 127
    %v74 = vadd.s32 %v73, 128
    %v75 = vadd.s32 %v73, 256
    %v76 = vadd.s32 %v73, 384
    %v77 = vadd.s32 %v73, 512
    %v78 = vadd.s32 %v73, 640
    %v79 = vadd.s32 %v73, 768
    %v80 = vadd.s32 %v73, 896
    %v81 = vand.u32 %v73, 31
    %v82 = vand.u32 %v74, 31
    %v83 = vand.u32 %v75, 31
    %v84 = vand.u32 %v76, 31
    %v85 = vand.u32 %v77, 31
    %v86 = vand.u32 %v78, 31
    %v87 = vand.u32 %v79, 31
    %v88 = vand.u32 %v80, 31
    %v91 = vcombine.high %v70, %v70
    %v93 = vunpack.c.l.s4 1983009808
    %v94 = vunpack.c.0.s8 %v93
    %v95 = vlaneseq
    %v96 = vshrl.u32 %v95, 7
    %v97 = vsub.s32 %v94, %v96
    %v98 = vrot.slane %v70, %v97
    %v100 = vunpack.c.l.s4 1983009808
    %v101 = vunpack.c.0.s8 %v100
    %v102 = vlaneseq
    %v103 = vshrl.u32 %v102, 7
    %v104 = vsub.s32 %v101, %v103
    %v105 = vrot.slane %v91, %v104
    %v106 = vcombine.high %v98, %v98
    %v107 = vcombine.high %v105, %v105
    %v108 = vcombine.high %v71, %v71
    %v110 = vunpack.c.l.s4 1983009808
    %v111 = vunpack.c.0.s8 %v110
    %v112 = vlaneseq
    %v113 = vshrl.u32 %v112, 7
    %v114 = vsub.s32 %v111, %v113
    %v115 = vrot.slane %v71, %v114
    %v117 = vunpack.c.l.s4 1983009808
    %v118 = vunpack.c.0.s8 %v117
    %v119 = vlaneseq
    %v120 = vshrl.u32 %v119, 7
    %v121 = vsub.s32 %v118, %v120
    %v122 = vrot.slane %v108, %v121
    %v123 = vcombine.high %v115, %v115
    %v124 = vcombine.high %v122, %v122
    %133 = vrot.lane.b32.xlu0 %v98, 33
    %v134 = vpop.permute.xlu0 %133
    %135 = vrot.lane.b32.xlu0 %v106, 33
    %v136 = vpop.permute.xlu0 %135
    %137 = vrot.lane.b32.xlu0 %v105, 33
    %v138 = vpop.permute.xlu0 %137
    %139 = vrot.lane.b32.xlu0 %v107, 33
    %v140 = vpop.permute.xlu0 %139
    %141 = vrot.lane.b32.xlu0 %v115, 33
    %v142 = vpop.permute.xlu0 %141
    %143 = vrot.lane.b32.xlu0 %v123, 33
    %v144 = vpop.permute.xlu0 %143
    %145 = vrot.lane.b32.xlu0 %v122, 33
    %v146 = vpop.permute.xlu0 %145
    %147 = vrot.lane.b32.xlu0 %v124, 33
    %v148 = vpop.permute.xlu0 %147
    %vm149 = vcmp.lt.s32.totalorder %v73, 33
    %v150 = vsel %vm149, %v146, %v148
    %v151 = vsel %vm149, %v144, %v146
    %v152 = vsel %vm149, %v142, %v144
    %v153 = vsel %vm149, %v140, %v142
    %v154 = vsel %vm149, %v138, %v140
    %v155 = vsel %vm149, %v136, %v138
    %v156 = vsel %vm149, %v134, %v136
    %v157 = vsel %vm149, %v148, %v134
    %vm158 = vcmp.ge.s32.totalorder %v73, 32
    %vm159 = vcmp.ge.s32.totalorder %v74, 32
    %vm160 = vcmp.ge.s32.totalorder %v75, 32
    %vm161 = vcmp.ge.s32.totalorder %v76, 32
    %vm162 = vcmp.ge.s32.totalorder %v77, 32
    %vm163 = vcmp.ge.s32.totalorder %v78, 32
    %vm164 = vcmp.ge.s32.totalorder %v79, 32
    %vm165 = vcmp.ge.s32.totalorder %v80, 32
    %vm166 = vcmp.ge.s32.totalorder %v81, 1
    %vm167 = vcmp.ge.s32.totalorder %v82, 1
    %vm168 = vcmp.ge.s32.totalorder %v83, 1
    %vm169 = vcmp.ge.s32.totalorder %v84, 1
    %vm170 = vcmp.ge.s32.totalorder %v85, 1
    %vm171 = vcmp.ge.s32.totalorder %v86, 1
    %vm172 = vcmp.ge.s32.totalorder %v87, 1
    %vm173 = vcmp.ge.s32.totalorder %v88, 1
    %vm174 = vmand %vm158, %vm166
    %vm175 = vmand %vm159, %vm167
    %vm176 = vmand %vm160, %vm168
    %vm177 = vmand %vm161, %vm169
    %vm178 = vmand %vm162, %vm170
    %vm179 = vmand %vm163, %vm171
    %vm180 = vmand %vm164, %vm172
    %vm181 = vmand %vm165, %vm173
    %v182 = vsel %vm174, %v157, 0.0
    %v183 = vsel %vm175, %v156, 0.0
    %v184 = vsel %vm176, %v155, 0.0
    %v185 = vsel %vm177, %v154, 0.0
    %v186 = vsel %vm178, %v153, 0.0
    %v187 = vsel %vm179, %v152, 0.0
    %v188 = vsel %vm180, %v151, 0.0
    %v189 = vsel %vm181, %v150, 0.0
    %190 = vrot.lane.b32.xlu0 %v98, 32
    %v191 = vpop.permute.xlu0 %190
    %192 = vrot.lane.b32.xlu0 %v106, 32
    %v193 = vpop.permute.xlu0 %192
    %194 = vrot.lane.b32.xlu0 %v105, 32
    %v195 = vpop.permute.xlu0 %194
    %196 = vrot.lane.b32.xlu0 %v107, 32
    %v197 = vpop.permute.xlu0 %196
    %198 = vrot.lane.b32.xlu0 %v115, 32
    %v199 = vpop.permute.xlu0 %198
    %200 = vrot.lane.b32.xlu0 %v123, 32
    %v201 = vpop.permute.xlu0 %200
    %202 = vrot.lane.b32.xlu0 %v122, 32
    %v203 = vpop.permute.xlu0 %202
    %204 = vrot.lane.b32.xlu0 %v124, 32
    %v205 = vpop.permute.xlu0 %204
    %vm206 = vcmp.lt.s32.totalorder %v73, 32
    %v207 = vsel %vm206, %v203, %v205
    %v208 = vsel %vm206, %v201, %v203
    %v209 = vsel %vm206, %v199, %v201
    %v210 = vsel %vm206, %v197, %v199
    %v211 = vsel %vm206, %v195, %v197
    %v212 = vsel %vm206, %v193, %v195
    %v213 = vsel %vm206, %v191, %v193
    %v214 = vsel %vm206, %v205, %v191
    %v215 = vsel %vm158, %v214, 0.0
    %v216 = vsel %vm159, %v213, 0.0
    %v217 = vsel %vm160, %v212, 0.0
    %v218 = vsel %vm161, %v211, 0.0
    %v219 = vsel %vm162, %v210, 0.0
    %v220 = vsel %vm163, %v209, 0.0
    %v221 = vsel %vm164, %v208, 0.0
    %v222 = vsel %vm165, %v207, 0.0
    %223 = vrot.lane.b32.xlu0 %v98, 31
    %v224 = vpop.permute.xlu0 %223
    %225 = vrot.lane.b32.xlu0 %v106, 31
    %v226 = vpop.permute.xlu0 %225
    %227 = vrot.lane.b32.xlu0 %v105, 31
    %v228 = vpop.permute.xlu0 %227
    %229 = vrot.lane.b32.xlu0 %v107, 31
    %v230 = vpop.permute.xlu0 %229
    %231 = vrot.lane.b32.xlu0 %v115, 31
    %v232 = vpop.permute.xlu0 %231
    %233 = vrot.lane.b32.xlu0 %v123, 31
    %v234 = vpop.permute.xlu0 %233
    %235 = vrot.lane.b32.xlu0 %v122, 31
    %v236 = vpop.permute.xlu0 %235
    %237 = vrot.lane.b32.xlu0 %v124, 31
    %v238 = vpop.permute.xlu0 %237
    %vm239 = vcmp.lt.s32.totalorder %v73, 31
    %v240 = vsel %vm239, %v236, %v238
    %v241 = vsel %vm239, %v234, %v236
    %v242 = vsel %vm239, %v232, %v234
    %v243 = vsel %vm239, %v230, %v232
    %v244 = vsel %vm239, %v228, %v230
    %v245 = vsel %vm239, %v226, %v228
    %v246 = vsel %vm239, %v224, %v226
    %v247 = vsel %vm239, %v238, %v224
    %vm248 = vcmp.le.s32.totalorder %v81, 30
    %vm249 = vcmp.le.s32.totalorder %v82, 30
    %vm250 = vcmp.le.s32.totalorder %v83, 30
    %vm251 = vcmp.le.s32.totalorder %v84, 30
    %vm252 = vcmp.le.s32.totalorder %v85, 30
    %vm253 = vcmp.le.s32.totalorder %v86, 30
    %vm254 = vcmp.le.s32.totalorder %v87, 30
    %vm255 = vcmp.le.s32.totalorder %v88, 30
    %vm256 = vmand %vm158, %vm248
    %vm257 = vmand %vm159, %vm249
    %vm258 = vmand %vm160, %vm250
    %vm259 = vmand %vm161, %vm251
    %vm260 = vmand %vm162, %vm252
    %vm261 = vmand %vm163, %vm253
    %vm262 = vmand %vm164, %vm254
    %vm263 = vmand %vm165, %vm255
    %v264 = vsel %vm256, %v247, 0.0
    %v265 = vsel %vm257, %v246, 0.0
    %v266 = vsel %vm258, %v245, 0.0
    %v267 = vsel %vm259, %v244, 0.0
    %v268 = vsel %vm260, %v243, 0.0
    %v269 = vsel %vm261, %v242, 0.0
    %v270 = vsel %vm262, %v241, 0.0
    %v271 = vsel %vm263, %v240, 0.0
    %272 = vrot.lane.b32.xlu0 %v98, 1
    %v273 = vpop.permute.xlu0 %272
    %274 = vrot.lane.b32.xlu0 %v106, 1
    %v275 = vpop.permute.xlu0 %274
    %276 = vrot.lane.b32.xlu0 %v105, 1
    %v277 = vpop.permute.xlu0 %276
    %278 = vrot.lane.b32.xlu0 %v107, 1
    %v279 = vpop.permute.xlu0 %278
    %280 = vrot.lane.b32.xlu0 %v115, 1
    %v281 = vpop.permute.xlu0 %280
    %282 = vrot.lane.b32.xlu0 %v123, 1
    %v283 = vpop.permute.xlu0 %282
    %284 = vrot.lane.b32.xlu0 %v122, 1
    %v285 = vpop.permute.xlu0 %284
    %286 = vrot.lane.b32.xlu0 %v124, 1
    %v287 = vpop.permute.xlu0 %286
    %vm288 = vcmp.lt.s32.totalorder %v73, 1
    %v289 = vsel %vm288, %v285, %v287
    %v290 = vsel %vm288, %v283, %v285
    %v291 = vsel %vm288, %v281, %v283
    %v292 = vsel %vm288, %v279, %v281
    %v293 = vsel %vm288, %v277, %v279
    %v294 = vsel %vm288, %v275, %v277
    %v295 = vsel %vm288, %v273, %v275
    %v296 = vsel %vm288, %v287, %v273
    %v297 = vsel %vm166, %v296, 0.0
    %v298 = vsel %vm167, %v295, 0.0
    %v299 = vsel %vm168, %v294, 0.0
    %v300 = vsel %vm169, %v293, 0.0
    %v301 = vsel %vm170, %v292, 0.0
    %v302 = vsel %vm171, %v291, 0.0
    %v303 = vsel %vm172, %v290, 0.0
    %v304 = vsel %vm173, %v289, 0.0
    %305 = vrot.lane.b32.xlu0 %v98, 127
    %v306 = vpop.permute.xlu0 %305
    %307 = vrot.lane.b32.xlu0 %v106, 127
    %v308 = vpop.permute.xlu0 %307
    %309 = vrot.lane.b32.xlu0 %v105, 127
    %v310 = vpop.permute.xlu0 %309
    %311 = vrot.lane.b32.xlu0 %v107, 127
    %v312 = vpop.permute.xlu0 %311
    %313 = vrot.lane.b32.xlu0 %v115, 127
    %v314 = vpop.permute.xlu0 %313
    %315 = vrot.lane.b32.xlu0 %v123, 127
    %v316 = vpop.permute.xlu0 %315
    %317 = vrot.lane.b32.xlu0 %v122, 127
    %v318 = vpop.permute.xlu0 %317
    %319 = vrot.lane.b32.xlu0 %v124, 127
    %v320 = vpop.permute.xlu0 %319
    %vm321 = vcmp.lt.s32.totalorder %v73, 127
    %v322 = vsel %vm321, %v318, %v320
    %v323 = vsel %vm321, %v316, %v318
    %v324 = vsel %vm321, %v314, %v316
    %v325 = vsel %vm321, %v312, %v314
    %v326 = vsel %vm321, %v310, %v312
    %v327 = vsel %vm321, %v308, %v310
    %v328 = vsel %vm321, %v306, %v308
    %v329 = vsel %vm321, %v320, %v306
    %v330 = vsel %vm248, %v328, 0.0
    %v331 = vsel %vm249, %v327, 0.0
    %v332 = vsel %vm250, %v326, 0.0
    %v333 = vsel %vm251, %v325, 0.0
    %v334 = vsel %vm252, %v324, 0.0
    %v335 = vsel %vm253, %v323, 0.0
    %v336 = vsel %vm254, %v322, 0.0
    %v337 = vsel %vm255, %v329, 0.0
    %338 = vrot.lane.b32.xlu0 %v98, 97
    %v339 = vpop.permute.xlu0 %338
    %340 = vrot.lane.b32.xlu0 %v106, 97
    %v341 = vpop.permute.xlu0 %340
    %342 = vrot.lane.b32.xlu0 %v105, 97
    %v343 = vpop.permute.xlu0 %342
    %344 = vrot.lane.b32.xlu0 %v107, 97
    %v345 = vpop.permute.xlu0 %344
    %346 = vrot.lane.b32.xlu0 %v115, 97
    %v347 = vpop.permute.xlu0 %346
    %348 = vrot.lane.b32.xlu0 %v123, 97
    %v349 = vpop.permute.xlu0 %348
    %350 = vrot.lane.b32.xlu0 %v122, 97
    %v351 = vpop.permute.xlu0 %350
    %352 = vrot.lane.b32.xlu0 %v124, 97
    %v353 = vpop.permute.xlu0 %352
    %vm354 = vcmp.lt.s32.totalorder %v73, 97
    %v355 = vsel %vm354, %v351, %v353
    %v356 = vsel %vm354, %v349, %v351
    %v357 = vsel %vm354, %v347, %v349
    %v358 = vsel %vm354, %v345, %v347
    %v359 = vsel %vm354, %v343, %v345
    %v360 = vsel %vm354, %v341, %v343
    %v361 = vsel %vm354, %v339, %v341
    %v362 = vsel %vm354, %v353, %v339
    %vm363 = vcmp.lt.s32.totalorder %v73, 992
    %vm364 = vcmp.lt.s32.totalorder %v74, 992
    %vm365 = vcmp.lt.s32.totalorder %v75, 992
    %vm366 = vcmp.lt.s32.totalorder %v76, 992
    %vm367 = vcmp.lt.s32.totalorder %v77, 992
    %vm368 = vcmp.lt.s32.totalorder %v78, 992
    %vm369 = vcmp.lt.s32.totalorder %v79, 992
    %vm370 = vcmp.lt.s32.totalorder %v80, 992
    %vm371 = vmand %vm363, %vm166
    %vm372 = vmand %vm364, %vm167
    %vm373 = vmand %vm365, %vm168
    %vm374 = vmand %vm366, %vm169
    %vm375 = vmand %vm367, %vm170
    %vm376 = vmand %vm368, %vm171
    %vm377 = vmand %vm369, %vm172
    %vm378 = vmand %vm370, %vm173
    %v379 = vsel %vm371, %v361, 0.0
    %v380 = vsel %vm372, %v360, 0.0
    %v381 = vsel %vm373, %v359, 0.0
    %v382 = vsel %vm374, %v358, 0.0
    %v383 = vsel %vm375, %v357, 0.0
    %v384 = vsel %vm376, %v356, 0.0
    %v385 = vsel %vm377, %v355, 0.0
    %v386 = vsel %vm378, %v362, 0.0
    %387 = vrot.lane.b32.xlu0 %v98, 96
    %v388 = vpop.permute.xlu0 %387
    %389 = vrot.lane.b32.xlu0 %v106, 96
    %v390 = vpop.permute.xlu0 %389
    %391 = vrot.lane.b32.xlu0 %v105, 96
    %v392 = vpop.permute.xlu0 %391
    %393 = vrot.lane.b32.xlu0 %v107, 96
    %v394 = vpop.permute.xlu0 %393
    %395 = vrot.lane.b32.xlu0 %v115, 96
    %v396 = vpop.permute.xlu0 %395
    %397 = vrot.lane.b32.xlu0 %v123, 96
    %v398 = vpop.permute.xlu0 %397
    %399 = vrot.lane.b32.xlu0 %v122, 96
    %v400 = vpop.permute.xlu0 %399
    %401 = vrot.lane.b32.xlu0 %v124, 96
    %v402 = vpop.permute.xlu0 %401
    %vm403 = vcmp.lt.s32.totalorder %v73, 96
    %v404 = vsel %vm403, %v400, %v402
    %v405 = vsel %vm403, %v398, %v400
    %v406 = vsel %vm403, %v396, %v398
    %v407 = vsel %vm403, %v394, %v396
    %v408 = vsel %vm403, %v392, %v394
    %v409 = vsel %vm403, %v390, %v392
    %v410 = vsel %vm403, %v388, %v390
    %v411 = vsel %vm403, %v402, %v388
    %v412 = vsel %vm363, %v410, 0.0
    %v413 = vsel %vm364, %v409, 0.0
    %v414 = vsel %vm365, %v408, 0.0
    %v415 = vsel %vm366, %v407, 0.0
    %v416 = vsel %vm367, %v406, 0.0
    %v417 = vsel %vm368, %v405, 0.0
    %v418 = vsel %vm369, %v404, 0.0
    %v419 = vsel %vm370, %v411, 0.0
    %420 = vrot.lane.b32.xlu0 %v98, 95
    %v421 = vpop.permute.xlu0 %420
    %422 = vrot.lane.b32.xlu0 %v106, 95
    %v423 = vpop.permute.xlu0 %422
    %424 = vrot.lane.b32.xlu0 %v105, 95
    %v425 = vpop.permute.xlu0 %424
    %426 = vrot.lane.b32.xlu0 %v107, 95
    %v427 = vpop.permute.xlu0 %426
    %428 = vrot.lane.b32.xlu0 %v115, 95
    %v429 = vpop.permute.xlu0 %428
    %430 = vrot.lane.b32.xlu0 %v123, 95
    %v431 = vpop.permute.xlu0 %430
    %432 = vrot.lane.b32.xlu0 %v122, 95
    %v433 = vpop.permute.xlu0 %432
    %434 = vrot.lane.b32.xlu0 %v124, 95
    %v435 = vpop.permute.xlu0 %434
    %vm436 = vcmp.lt.s32.totalorder %v73, 95
    %v437 = vsel %vm436, %v433, %v435
    %v438 = vsel %vm436, %v431, %v433
    %v439 = vsel %vm436, %v429, %v431
    %v440 = vsel %vm436, %v427, %v429
    %v441 = vsel %vm436, %v425, %v427
    %v442 = vsel %vm436, %v423, %v425
    %v443 = vsel %vm436, %v421, %v423
    %v444 = vsel %vm436, %v435, %v421
    %vm445 = vmand %vm363, %vm248
    %vm446 = vmand %vm364, %vm249
    %vm447 = vmand %vm365, %vm250
    %vm448 = vmand %vm366, %vm251
    %vm449 = vmand %vm367, %vm252
    %vm450 = vmand %vm368, %vm253
    %vm451 = vmand %vm369, %vm254
    %vm452 = vmand %vm370, %vm255
    %v453 = vsel %vm445, %v443, 0.0
    %v454 = vsel %vm446, %v442, 0.0
    %v455 = vsel %vm447, %v441, 0.0
    %v456 = vsel %vm448, %v440, 0.0
    %v457 = vsel %vm449, %v439, 0.0
    %v458 = vsel %vm450, %v438, 0.0
    %v459 = vsel %vm451, %v437, 0.0
    %v460 = vsel %vm452, %v444, 0.0
    %s461 = sld [smem:[#allocation7]]
    %v462 = vstv %s461
    %v463 = vmul.f32 %v462, %v182
    %v464 = vmul.f32 %v462, %v183
    %v465 = vmul.f32 %v462, %v184
    %v466 = vmul.f32 %v462, %v185
    %v467 = vmul.f32 %v462, %v186
    %v468 = vmul.f32 %v462, %v187
    %v469 = vmul.f32 %v462, %v188
    %v470 = vmul.f32 %v462, %v189
    %s471 = sld [smem:[#allocation7 + $0x1]]
    %v472 = vstv %s471
    %v473 = vmul.f32 %v472, %v215
    %v474 = vmul.f32 %v472, %v216
    %v475 = vmul.f32 %v472, %v217
    %v476 = vmul.f32 %v472, %v218
    %v477 = vmul.f32 %v472, %v219
    %v478 = vmul.f32 %v472, %v220
    %v479 = vmul.f32 %v472, %v221
    %v480 = vmul.f32 %v472, %v222
    %v481 = vadd.f32 %v463, %v473
    %v482 = vadd.f32 %v464, %v474
    %v483 = vadd.f32 %v465, %v475
    %v484 = vadd.f32 %v466, %v476
    %v485 = vadd.f32 %v467, %v477
    %v486 = vadd.f32 %v468, %v478
    %v487 = vadd.f32 %v469, %v479
    %v488 = vadd.f32 %v470, %v480
    %s489 = sld [smem:[#allocation7 + $0x2]]
    %v490 = vstv %s489
    %v491 = vmul.f32 %v490, %v264
    %v492 = vmul.f32 %v490, %v265
    %v493 = vmul.f32 %v490, %v266
    %v494 = vmul.f32 %v490, %v267
    %v495 = vmul.f32 %v490, %v268
    %v496 = vmul.f32 %v490, %v269
    %v497 = vmul.f32 %v490, %v270
    %v498 = vmul.f32 %v490, %v271
    %v499 = vadd.f32 %v481, %v491
    %v500 = vadd.f32 %v482, %v492
    %v501 = vadd.f32 %v483, %v493
    %v502 = vadd.f32 %v484, %v494
    %v503 = vadd.f32 %v485, %v495
    %v504 = vadd.f32 %v486, %v496
    %v505 = vadd.f32 %v487, %v497
    %v506 = vadd.f32 %v488, %v498
    %s507 = sld [smem:[#allocation7 + $0x3]]
    %v508 = vstv %s507
    %v509 = vmul.f32 %v508, %v297
    %v510 = vmul.f32 %v508, %v298
    %v511 = vmul.f32 %v508, %v299
    %v512 = vmul.f32 %v508, %v300
    %v513 = vmul.f32 %v508, %v301
    %v514 = vmul.f32 %v508, %v302
    %v515 = vmul.f32 %v508, %v303
    %v516 = vmul.f32 %v508, %v304
    %v517 = vadd.f32 %v499, %v509
    %v518 = vadd.f32 %v500, %v510
    %v519 = vadd.f32 %v501, %v511
    %v520 = vadd.f32 %v502, %v512
    %v521 = vadd.f32 %v503, %v513
    %v522 = vadd.f32 %v504, %v514
    %v523 = vadd.f32 %v505, %v515
    %v524 = vadd.f32 %v506, %v516
    %s525 = sld [smem:[#allocation7 + $0x4]]
    %v526 = vstv %s525
    %v527 = vmul.f32 %v526, %v70
    %v528 = vmul.f32 %v526, %v71
    %v531 = vcombine.high %v527, %v527
    %v533 = vunpack.c.l.s4 1983009808
    %v534 = vunpack.c.0.s8 %v533
    %v535 = vlaneseq
    %v536 = vshrl.u32 %v535, 7
    %v537 = vsub.s32 %v534, %v536
    %v538 = vrot.slane %v527, %v537
    %v540 = vunpack.c.l.s4 1983009808
    %v541 = vunpack.c.0.s8 %v540
    %v542 = vlaneseq
    %v543 = vshrl.u32 %v542, 7
    %v544 = vsub.s32 %v541, %v543
    %v545 = vrot.slane %v531, %v544
    %v546 = vcombine.high %v538, %v538
    %v547 = vcombine.high %v545, %v545
    %v548 = vcombine.high %v528, %v528
    %v550 = vunpack.c.l.s4 1983009808
    %v551 = vunpack.c.0.s8 %v550
    %v552 = vlaneseq
    %v553 = vshrl.u32 %v552, 7
    %v554 = vsub.s32 %v551, %v553
    %v555 = vrot.slane %v528, %v554
    %v557 = vunpack.c.l.s4 1983009808
    %v558 = vunpack.c.0.s8 %v557
    %v559 = vlaneseq
    %v560 = vshrl.u32 %v559, 7
    %v561 = vsub.s32 %v558, %v560
    %v562 = vrot.slane %v548, %v561
    %v563 = vcombine.high %v555, %v555
    %v564 = vcombine.high %v562, %v562
    %v573 = vadd.f32 %v517, %v538
    %v574 = vadd.f32 %v518, %v546
    %v575 = vadd.f32 %v519, %v545
    %v576 = vadd.f32 %v520, %v547
    %v577 = vadd.f32 %v521, %v555
    %v578 = vadd.f32 %v522, %v563
    %v579 = vadd.f32 %v523, %v562
    %v580 = vadd.f32 %v524, %v564
    %s581 = sld [smem:[#allocation7 + $0x5]]
    %v582 = vstv %s581
    %v583 = vmul.f32 %v582, %v330
    %v584 = vmul.f32 %v582, %v331
    %v585 = vmul.f32 %v582, %v332
    %v586 = vmul.f32 %v582, %v333
    %v587 = vmul.f32 %v582, %v334
    %v588 = vmul.f32 %v582, %v335
    %v589 = vmul.f32 %v582, %v336
    %v590 = vmul.f32 %v582, %v337
    %v591 = vadd.f32 %v573, %v583
    %v592 = vadd.f32 %v574, %v584
    %v593 = vadd.f32 %v575, %v585
    %v594 = vadd.f32 %v576, %v586
    %v595 = vadd.f32 %v577, %v587
    %v596 = vadd.f32 %v578, %v588
    %v597 = vadd.f32 %v579, %v589
    %v598 = vadd.f32 %v580, %v590
    %s599 = sld [smem:[#allocation7 + $0x6]]
    %v600 = vstv %s599
    %v601 = vmul.f32 %v600, %v379
    %v602 = vmul.f32 %v600, %v380
    %v603 = vmul.f32 %v600, %v381
    %v604 = vmul.f32 %v600, %v382
    %v605 = vmul.f32 %v600, %v383
    %v606 = vmul.f32 %v600, %v384
    %v607 = vmul.f32 %v600, %v385
    %v608 = vmul.f32 %v600, %v386
    %v609 = vadd.f32 %v591, %v601
    %v610 = vadd.f32 %v592, %v602
    %v611 = vadd.f32 %v593, %v603
    %v612 = vadd.f32 %v594, %v604
    %v613 = vadd.f32 %v595, %v605
    %v614 = vadd.f32 %v596, %v606
    %v615 = vadd.f32 %v597, %v607
    %v616 = vadd.f32 %v598, %v608
    %s617 = sld [smem:[#allocation7 + $0x7]]
    %v618 = vstv %s617
    %v619 = vmul.f32 %v618, %v412
    %v620 = vmul.f32 %v618, %v413
    %v621 = vmul.f32 %v618, %v414
    %v622 = vmul.f32 %v618, %v415
    %v623 = vmul.f32 %v618, %v416
    %v624 = vmul.f32 %v618, %v417
    %v625 = vmul.f32 %v618, %v418
    %v626 = vmul.f32 %v618, %v419
    %v627 = vadd.f32 %v609, %v619
    %v628 = vadd.f32 %v610, %v620
    %v629 = vadd.f32 %v611, %v621
    %v630 = vadd.f32 %v612, %v622
    %v631 = vadd.f32 %v613, %v623
    %v632 = vadd.f32 %v614, %v624
    %v633 = vadd.f32 %v615, %v625
    %v634 = vadd.f32 %v616, %v626
    %s635 = sld [smem:[#allocation7 + $0x8]]
    %v636 = vstv %s635
    %v637 = vmul.f32 %v636, %v453
    %v638 = vmul.f32 %v636, %v454
    %v639 = vmul.f32 %v636, %v455
    %v640 = vmul.f32 %v636, %v456
    %v641 = vmul.f32 %v636, %v457
    %v642 = vmul.f32 %v636, %v458
    %v643 = vmul.f32 %v636, %v459
    %v644 = vmul.f32 %v636, %v460
    %v645 = vadd.f32 %v627, %v637
    %v646 = vadd.f32 %v628, %v638
    %v647 = vadd.f32 %v629, %v639
    %v648 = vadd.f32 %v630, %v640
    %v649 = vadd.f32 %v631, %v641
    %v650 = vadd.f32 %v632, %v642
    %v651 = vadd.f32 %v633, %v643
    %v652 = vadd.f32 %v634, %v644
    %s653 = sld [smem:[#allocation8]]
    %v654 = vstv %s653
    %v655 = vadd.f32 %v645, %v654
    %v656 = vadd.f32 %v646, %v654
    %v657 = vadd.f32 %v647, %v654
    %v658 = vadd.f32 %v648, %v654
    %v659 = vadd.f32 %v649, %v654
    %v660 = vadd.f32 %v650, %v654
    %v661 = vadd.f32 %v651, %v654
    %v662 = vadd.f32 %v652, %v654
    %v671 = vcombine.low %v655, %v656
    %v672 = vcombine.low %v657, %v658
    %v673 = vcombine.low %v659, %v660
    %v674 = vcombine.low %v661, %v662
    %v676 = vunpack.c.l.s4 1966171168
    %v677 = vunpack.c.0.s8 %v676
    %v678 = vlaneseq
    %v679 = vshrl.u32 %v678, 7
    %v680 = vsub.s32 %v677, %v679
    %v681 = vrot.slane %v671, %v680
    %v683 = vunpack.c.l.s4 1966171168
    %v684 = vunpack.c.0.s8 %v683
    %v685 = vlaneseq
    %v686 = vshrl.u32 %v685, 7
    %v687 = vsub.s32 %v684, %v686
    %v688 = vrot.slane %v672, %v687
    %v690 = vunpack.c.l.s4 1966171168
    %v691 = vunpack.c.0.s8 %v690
    %v692 = vlaneseq
    %v693 = vshrl.u32 %v692, 7
    %v694 = vsub.s32 %v691, %v693
    %v695 = vrot.slane %v673, %v694
    %v697 = vunpack.c.l.s4 1966171168
    %v698 = vunpack.c.0.s8 %v697
    %v699 = vlaneseq
    %v700 = vshrl.u32 %v699, 7
    %v701 = vsub.s32 %v698, %v700
    %v702 = vrot.slane %v674, %v701
    %v703 = vcombine.low %v681, %v688
    %v704 = vcombine.high %v681, %v688
    %v705 = vcombine.low %v695, %v702
    %v706 = vcombine.high %v695, %v702
    %v708 = vunpack.c.l.s4 1966171168
    %v709 = vunpack.c.0.s8 %v708
    %v710 = vlaneseq
    %v711 = vshrl.u32 %v710, 7
    %v712 = vsub.s32 %v709, %v711
    %v713 = vrot.slane %v703, %v712
    %v715 = vunpack.c.l.s4 1966171168
    %v716 = vunpack.c.0.s8 %v715
    %v717 = vlaneseq
    %v718 = vshrl.u32 %v717, 7
    %v719 = vsub.s32 %v716, %v718
    %v720 = vrot.slane %v704, %v719
    %v722 = vunpack.c.l.s4 1966171168
    %v723 = vunpack.c.0.s8 %v722
    %v724 = vlaneseq
    %v725 = vshrl.u32 %v724, 7
    %v726 = vsub.s32 %v723, %v725
    %v727 = vrot.slane %v705, %v726
    %v729 = vunpack.c.l.s4 1966171168
    %v730 = vunpack.c.0.s8 %v729
    %v731 = vlaneseq
    %v732 = vshrl.u32 %v731, 7
    %v733 = vsub.s32 %v730, %v732
    %v734 = vrot.slane %v706, %v733
    %v735 = vcombine.low %v713, %v727
    %v736 = vcombine.low %v720, %v734
    %739 = vst [vmem:[%s4] ss:$4 sm:$0xff] %v735
    %s740 = scalar_lea.vmem %s4, 32
    %741 = vst [vmem:[%s740] ss:$4 sm:$0xff] %v736
    %s742 = sld [smem:[#allocation7 + $0x9]]
    %v743 = vstv %s742
    %v744 = vmul.f32 %v743, %v182
    %v745 = vmul.f32 %v743, %v183
    %v746 = vmul.f32 %v743, %v184
    %v747 = vmul.f32 %v743, %v185
    %v748 = vmul.f32 %v743, %v186
    %v749 = vmul.f32 %v743, %v187
    %v750 = vmul.f32 %v743, %v188
    %v751 = vmul.f32 %v743, %v189
    %s752 = sld [smem:[#allocation7 + $0xa]]
    %v753 = vstv %s752
    %v754 = vmul.f32 %v753, %v215
    %v755 = vmul.f32 %v753, %v216
    %v756 = vmul.f32 %v753, %v217
    %v757 = vmul.f32 %v753, %v218
    %v758 = vmul.f32 %v753, %v219
    %v759 = vmul.f32 %v753, %v220
    %v760 = vmul.f32 %v753, %v221
    %v761 = vmul.f32 %v753, %v222
    %v762 = vadd.f32 %v744, %v754
    %v763 = vadd.f32 %v745, %v755
    %v764 = vadd.f32 %v746, %v756
    %v765 = vadd.f32 %v747, %v757
    %v766 = vadd.f32 %v748, %v758
    %v767 = vadd.f32 %v749, %v759
    %v768 = vadd.f32 %v750, %v760
    %v769 = vadd.f32 %v751, %v761
    %s770 = sld [smem:[#allocation7 + $0xb]]
    %v771 = vstv %s770
    %v772 = vmul.f32 %v771, %v264
    %v773 = vmul.f32 %v771, %v265
    %v774 = vmul.f32 %v771, %v266
    %v775 = vmul.f32 %v771, %v267
    %v776 = vmul.f32 %v771, %v268
    %v777 = vmul.f32 %v771, %v269
    %v778 = vmul.f32 %v771, %v270
    %v779 = vmul.f32 %v771, %v271
    %v780 = vadd.f32 %v762, %v772
    %v781 = vadd.f32 %v763, %v773
    %v782 = vadd.f32 %v764, %v774
    %v783 = vadd.f32 %v765, %v775
    %v784 = vadd.f32 %v766, %v776
    %v785 = vadd.f32 %v767, %v777
    %v786 = vadd.f32 %v768, %v778
    %v787 = vadd.f32 %v769, %v779
    %s788 = sld [smem:[#allocation7 + $0xc]]
    %v789 = vstv %s788
    %v790 = vmul.f32 %v789, %v297
    %v791 = vmul.f32 %v789, %v298
    %v792 = vmul.f32 %v789, %v299
    %v793 = vmul.f32 %v789, %v300
    %v794 = vmul.f32 %v789, %v301
    %v795 = vmul.f32 %v789, %v302
    %v796 = vmul.f32 %v789, %v303
    %v797 = vmul.f32 %v789, %v304
    %v798 = vadd.f32 %v780, %v790
    %v799 = vadd.f32 %v781, %v791
    %v800 = vadd.f32 %v782, %v792
    %v801 = vadd.f32 %v783, %v793
    %v802 = vadd.f32 %v784, %v794
    %v803 = vadd.f32 %v785, %v795
    %v804 = vadd.f32 %v786, %v796
    %v805 = vadd.f32 %v787, %v797
    %s806 = sld [smem:[#allocation7 + $0xd]]
    %v807 = vstv %s806
    %v808 = vmul.f32 %v807, %v70
    %v809 = vmul.f32 %v807, %v71
    %v812 = vcombine.high %v808, %v808
    %v814 = vunpack.c.l.s4 1983009808
    %v815 = vunpack.c.0.s8 %v814
    %v816 = vlaneseq
    %v817 = vshrl.u32 %v816, 7
    %v818 = vsub.s32 %v815, %v817
    %v819 = vrot.slane %v808, %v818
    %v821 = vunpack.c.l.s4 1983009808
    %v822 = vunpack.c.0.s8 %v821
    %v823 = vlaneseq
    %v824 = vshrl.u32 %v823, 7
    %v825 = vsub.s32 %v822, %v824
    %v826 = vrot.slane %v812, %v825
    %v827 = vcombine.high %v819, %v819
    %v828 = vcombine.high %v826, %v826
    %v829 = vcombine.high %v809, %v809
    %v831 = vunpack.c.l.s4 1983009808
    %v832 = vunpack.c.0.s8 %v831
    %v833 = vlaneseq
    %v834 = vshrl.u32 %v833, 7
    %v835 = vsub.s32 %v832, %v834
    %v836 = vrot.slane %v809, %v835
    %v838 = vunpack.c.l.s4 1983009808
    %v839 = vunpack.c.0.s8 %v838
    %v840 = vlaneseq
    %v841 = vshrl.u32 %v840, 7
    %v842 = vsub.s32 %v839, %v841
    %v843 = vrot.slane %v829, %v842
    %v844 = vcombine.high %v836, %v836
    %v845 = vcombine.high %v843, %v843
    %v854 = vadd.f32 %v798, %v819
    %v855 = vadd.f32 %v799, %v827
    %v856 = vadd.f32 %v800, %v826
    %v857 = vadd.f32 %v801, %v828
    %v858 = vadd.f32 %v802, %v836
    %v859 = vadd.f32 %v803, %v844
    %v860 = vadd.f32 %v804, %v843
    %v861 = vadd.f32 %v805, %v845
    %s862 = sld [smem:[#allocation7 + $0xe]]
    %v863 = vstv %s862
    %v864 = vmul.f32 %v863, %v330
    %v865 = vmul.f32 %v863, %v331
    %v866 = vmul.f32 %v863, %v332
    %v867 = vmul.f32 %v863, %v333
    %v868 = vmul.f32 %v863, %v334
    %v869 = vmul.f32 %v863, %v335
    %v870 = vmul.f32 %v863, %v336
    %v871 = vmul.f32 %v863, %v337
    %v872 = vadd.f32 %v854, %v864
    %v873 = vadd.f32 %v855, %v865
    %v874 = vadd.f32 %v856, %v866
    %v875 = vadd.f32 %v857, %v867
    %v876 = vadd.f32 %v858, %v868
    %v877 = vadd.f32 %v859, %v869
    %v878 = vadd.f32 %v860, %v870
    %v879 = vadd.f32 %v861, %v871
    %s880 = sld [smem:[#allocation7 + $0xf]]
    %v881 = vstv %s880
    %v882 = vmul.f32 %v881, %v379
    %v883 = vmul.f32 %v881, %v380
    %v884 = vmul.f32 %v881, %v381
    %v885 = vmul.f32 %v881, %v382
    %v886 = vmul.f32 %v881, %v383
    %v887 = vmul.f32 %v881, %v384
    %v888 = vmul.f32 %v881, %v385
    %v889 = vmul.f32 %v881, %v386
    %v890 = vadd.f32 %v872, %v882
    %v891 = vadd.f32 %v873, %v883
    %v892 = vadd.f32 %v874, %v884
    %v893 = vadd.f32 %v875, %v885
    %v894 = vadd.f32 %v876, %v886
    %v895 = vadd.f32 %v877, %v887
    %v896 = vadd.f32 %v878, %v888
    %v897 = vadd.f32 %v879, %v889
    %s898 = sld [smem:[#allocation7 + $0x10]]
    %v899 = vstv %s898
    %v900 = vmul.f32 %v899, %v412
    %v901 = vmul.f32 %v899, %v413
    %v902 = vmul.f32 %v899, %v414
    %v903 = vmul.f32 %v899, %v415
    %v904 = vmul.f32 %v899, %v416
    %v905 = vmul.f32 %v899, %v417
    %v906 = vmul.f32 %v899, %v418
    %v907 = vmul.f32 %v899, %v419
    %v908 = vadd.f32 %v890, %v900
    %v909 = vadd.f32 %v891, %v901
    %v910 = vadd.f32 %v892, %v902
    %v911 = vadd.f32 %v893, %v903
    %v912 = vadd.f32 %v894, %v904
    %v913 = vadd.f32 %v895, %v905
    %v914 = vadd.f32 %v896, %v906
    %v915 = vadd.f32 %v897, %v907
    %s916 = sld [smem:[#allocation7 + $0x11]]
    %v917 = vstv %s916
    %v918 = vmul.f32 %v917, %v453
    %v919 = vmul.f32 %v917, %v454
    %v920 = vmul.f32 %v917, %v455
    %v921 = vmul.f32 %v917, %v456
    %v922 = vmul.f32 %v917, %v457
    %v923 = vmul.f32 %v917, %v458
    %v924 = vmul.f32 %v917, %v459
    %v925 = vmul.f32 %v917, %v460
    %v926 = vadd.f32 %v908, %v918
    %v927 = vadd.f32 %v909, %v919
    %v928 = vadd.f32 %v910, %v920
    %v929 = vadd.f32 %v911, %v921
    %v930 = vadd.f32 %v912, %v922
    %v931 = vadd.f32 %v913, %v923
    %v932 = vadd.f32 %v914, %v924
    %v933 = vadd.f32 %v915, %v925
    %s934 = sld [smem:[#allocation8 + $0x1]]
    %v935 = vstv %s934
    %v936 = vadd.f32 %v926, %v935
    %v937 = vadd.f32 %v927, %v935
    %v938 = vadd.f32 %v928, %v935
    %v939 = vadd.f32 %v929, %v935
    %v940 = vadd.f32 %v930, %v935
    %v941 = vadd.f32 %v931, %v935
    %v942 = vadd.f32 %v932, %v935
    %v943 = vadd.f32 %v933, %v935
    %v952 = vcombine.low %v936, %v937
    %v953 = vcombine.low %v938, %v939
    %v954 = vcombine.low %v940, %v941
    %v955 = vcombine.low %v942, %v943
    %v957 = vunpack.c.l.s4 1966171168
    %v958 = vunpack.c.0.s8 %v957
    %v959 = vlaneseq
    %v960 = vshrl.u32 %v959, 7
    %v961 = vsub.s32 %v958, %v960
    %v962 = vrot.slane %v952, %v961
    %v964 = vunpack.c.l.s4 1966171168
    %v965 = vunpack.c.0.s8 %v964
    %v966 = vlaneseq
    %v967 = vshrl.u32 %v966, 7
    %v968 = vsub.s32 %v965, %v967
    %v969 = vrot.slane %v953, %v968
    %v971 = vunpack.c.l.s4 1966171168
    %v972 = vunpack.c.0.s8 %v971
    %v973 = vlaneseq
    %v974 = vshrl.u32 %v973, 7
    %v975 = vsub.s32 %v972, %v974
    %v976 = vrot.slane %v954, %v975
    %v978 = vunpack.c.l.s4 1966171168
    %v979 = vunpack.c.0.s8 %v978
    %v980 = vlaneseq
    %v981 = vshrl.u32 %v980, 7
    %v982 = vsub.s32 %v979, %v981
    %v983 = vrot.slane %v955, %v982
    %v984 = vcombine.low %v962, %v969
    %v985 = vcombine.high %v962, %v969
    %v986 = vcombine.low %v976, %v983
    %v987 = vcombine.high %v976, %v983
    %v989 = vunpack.c.l.s4 1966171168
    %v990 = vunpack.c.0.s8 %v989
    %v991 = vlaneseq
    %v992 = vshrl.u32 %v991, 7
    %v993 = vsub.s32 %v990, %v992
    %v994 = vrot.slane %v984, %v993
    %v996 = vunpack.c.l.s4 1966171168
    %v997 = vunpack.c.0.s8 %v996
    %v998 = vlaneseq
    %v999 = vshrl.u32 %v998, 7
    %v1000 = vsub.s32 %v997, %v999
    %v1001 = vrot.slane %v985, %v1000
    %v1003 = vunpack.c.l.s4 1966171168
    %v1004 = vunpack.c.0.s8 %v1003
    %v1005 = vlaneseq
    %v1006 = vshrl.u32 %v1005, 7
    %v1007 = vsub.s32 %v1004, %v1006
    %v1008 = vrot.slane %v986, %v1007
    %v1010 = vunpack.c.l.s4 1966171168
    %v1011 = vunpack.c.0.s8 %v1010
    %v1012 = vlaneseq
    %v1013 = vshrl.u32 %v1012, 7
    %v1014 = vsub.s32 %v1011, %v1013
    %v1015 = vrot.slane %v987, %v1014
    %v1016 = vcombine.low %v994, %v1008
    %v1017 = vcombine.low %v1001, %v1015
    %s1020 = scalar_lea.vmem %s4, 1
    %1021 = vst [vmem:[%s1020] ss:$4 sm:$0xff] %v1016
    %s1022 = scalar_lea.vmem %s4, 33
    %1023 = vst [vmem:[%s1022] ss:$4 sm:$0xff] %v1017
    %s1024 = sld [smem:[#allocation7 + $0x12]]
    %v1025 = vstv %s1024
    %v1026 = vmul.f32 %v1025, %v182
    %v1027 = vmul.f32 %v1025, %v183
    %v1028 = vmul.f32 %v1025, %v184
    %v1029 = vmul.f32 %v1025, %v185
    %v1030 = vmul.f32 %v1025, %v186
    %v1031 = vmul.f32 %v1025, %v187
    %v1032 = vmul.f32 %v1025, %v188
    %v1033 = vmul.f32 %v1025, %v189
    %s1034 = sld [smem:[#allocation7 + $0x13]]
    %v1035 = vstv %s1034
    %v1036 = vmul.f32 %v1035, %v215
    %v1037 = vmul.f32 %v1035, %v216
    %v1038 = vmul.f32 %v1035, %v217
    %v1039 = vmul.f32 %v1035, %v218
    %v1040 = vmul.f32 %v1035, %v219
    %v1041 = vmul.f32 %v1035, %v220
    %v1042 = vmul.f32 %v1035, %v221
    %v1043 = vmul.f32 %v1035, %v222
    %v1044 = vadd.f32 %v1026, %v1036
    %v1045 = vadd.f32 %v1027, %v1037
    %v1046 = vadd.f32 %v1028, %v1038
    %v1047 = vadd.f32 %v1029, %v1039
    %v1048 = vadd.f32 %v1030, %v1040
    %v1049 = vadd.f32 %v1031, %v1041
    %v1050 = vadd.f32 %v1032, %v1042
    %v1051 = vadd.f32 %v1033, %v1043
    %s1052 = sld [smem:[#allocation7 + $0x14]]
    %v1053 = vstv %s1052
    %v1054 = vmul.f32 %v1053, %v264
    %v1055 = vmul.f32 %v1053, %v265
    %v1056 = vmul.f32 %v1053, %v266
    %v1057 = vmul.f32 %v1053, %v267
    %v1058 = vmul.f32 %v1053, %v268
    %v1059 = vmul.f32 %v1053, %v269
    %v1060 = vmul.f32 %v1053, %v270
    %v1061 = vmul.f32 %v1053, %v271
    %v1062 = vadd.f32 %v1044, %v1054
    %v1063 = vadd.f32 %v1045, %v1055
    %v1064 = vadd.f32 %v1046, %v1056
    %v1065 = vadd.f32 %v1047, %v1057
    %v1066 = vadd.f32 %v1048, %v1058
    %v1067 = vadd.f32 %v1049, %v1059
    %v1068 = vadd.f32 %v1050, %v1060
    %v1069 = vadd.f32 %v1051, %v1061
    %s1070 = sld [smem:[#allocation7 + $0x15]]
    %v1071 = vstv %s1070
    %v1072 = vmul.f32 %v1071, %v297
    %v1073 = vmul.f32 %v1071, %v298
    %v1074 = vmul.f32 %v1071, %v299
    %v1075 = vmul.f32 %v1071, %v300
    %v1076 = vmul.f32 %v1071, %v301
    %v1077 = vmul.f32 %v1071, %v302
    %v1078 = vmul.f32 %v1071, %v303
    %v1079 = vmul.f32 %v1071, %v304
    %v1080 = vadd.f32 %v1062, %v1072
    %v1081 = vadd.f32 %v1063, %v1073
    %v1082 = vadd.f32 %v1064, %v1074
    %v1083 = vadd.f32 %v1065, %v1075
    %v1084 = vadd.f32 %v1066, %v1076
    %v1085 = vadd.f32 %v1067, %v1077
    %v1086 = vadd.f32 %v1068, %v1078
    %v1087 = vadd.f32 %v1069, %v1079
    %s1088 = sld [smem:[#allocation7 + $0x16]]
    %v1089 = vstv %s1088
    %v1090 = vmul.f32 %v1089, %v70
    %v1091 = vmul.f32 %v1089, %v71
    %v1094 = vcombine.high %v1090, %v1090
    %v1096 = vunpack.c.l.s4 1983009808
    %v1097 = vunpack.c.0.s8 %v1096
    %v1098 = vlaneseq
    %v1099 = vshrl.u32 %v1098, 7
    %v1100 = vsub.s32 %v1097, %v1099
    %v1101 = vrot.slane %v1090, %v1100
    %v1103 = vunpack.c.l.s4 1983009808
    %v1104 = vunpack.c.0.s8 %v1103
    %v1105 = vlaneseq
    %v1106 = vshrl.u32 %v1105, 7
    %v1107 = vsub.s32 %v1104, %v1106
    %v1108 = vrot.slane %v1094, %v1107
    %v1109 = vcombine.high %v1101, %v1101
    %v1110 = vcombine.high %v1108, %v1108
    %v1111 = vcombine.high %v1091, %v1091
    %v1113 = vunpack.c.l.s4 1983009808
    %v1114 = vunpack.c.0.s8 %v1113
    %v1115 = vlaneseq
    %v1116 = vshrl.u32 %v1115, 7
    %v1117 = vsub.s32 %v1114, %v1116
    %v1118 = vrot.slane %v1091, %v1117
    %v1120 = vunpack.c.l.s4 1983009808
    %v1121 = vunpack.c.0.s8 %v1120
    %v1122 = vlaneseq
    %v1123 = vshrl.u32 %v1122, 7
    %v1124 = vsub.s32 %v1121, %v1123
    %v1125 = vrot.slane %v1111, %v1124
    %v1126 = vcombine.high %v1118, %v1118
    %v1127 = vcombine.high %v1125, %v1125
    %v1136 = vadd.f32 %v1080, %v1101
    %v1137 = vadd.f32 %v1081, %v1109
    %v1138 = vadd.f32 %v1082, %v1108
    %v1139 = vadd.f32 %v1083, %v1110
    %v1140 = vadd.f32 %v1084, %v1118
    %v1141 = vadd.f32 %v1085, %v1126
    %v1142 = vadd.f32 %v1086, %v1125
    %v1143 = vadd.f32 %v1087, %v1127
    %s1144 = sld [smem:[#allocation7 + $0x17]]
    %v1145 = vstv %s1144
    %v1146 = vmul.f32 %v1145, %v330
    %v1147 = vmul.f32 %v1145, %v331
    %v1148 = vmul.f32 %v1145, %v332
    %v1149 = vmul.f32 %v1145, %v333
    %v1150 = vmul.f32 %v1145, %v334
    %v1151 = vmul.f32 %v1145, %v335
    %v1152 = vmul.f32 %v1145, %v336
    %v1153 = vmul.f32 %v1145, %v337
    %v1154 = vadd.f32 %v1136, %v1146
    %v1155 = vadd.f32 %v1137, %v1147
    %v1156 = vadd.f32 %v1138, %v1148
    %v1157 = vadd.f32 %v1139, %v1149
    %v1158 = vadd.f32 %v1140, %v1150
    %v1159 = vadd.f32 %v1141, %v1151
    %v1160 = vadd.f32 %v1142, %v1152
    %v1161 = vadd.f32 %v1143, %v1153
    %s1162 = sld [smem:[#allocation7 + $0x18]]
    %v1163 = vstv %s1162
    %v1164 = vmul.f32 %v1163, %v379
    %v1165 = vmul.f32 %v1163, %v380
    %v1166 = vmul.f32 %v1163, %v381
    %v1167 = vmul.f32 %v1163, %v382
    %v1168 = vmul.f32 %v1163, %v383
    %v1169 = vmul.f32 %v1163, %v384
    %v1170 = vmul.f32 %v1163, %v385
    %v1171 = vmul.f32 %v1163, %v386
    %v1172 = vadd.f32 %v1154, %v1164
    %v1173 = vadd.f32 %v1155, %v1165
    %v1174 = vadd.f32 %v1156, %v1166
    %v1175 = vadd.f32 %v1157, %v1167
    %v1176 = vadd.f32 %v1158, %v1168
    %v1177 = vadd.f32 %v1159, %v1169
    %v1178 = vadd.f32 %v1160, %v1170
    %v1179 = vadd.f32 %v1161, %v1171
    %s1180 = sld [smem:[#allocation7 + $0x19]]
    %v1181 = vstv %s1180
    %v1182 = vmul.f32 %v1181, %v412
    %v1183 = vmul.f32 %v1181, %v413
    %v1184 = vmul.f32 %v1181, %v414
    %v1185 = vmul.f32 %v1181, %v415
    %v1186 = vmul.f32 %v1181, %v416
    %v1187 = vmul.f32 %v1181, %v417
    %v1188 = vmul.f32 %v1181, %v418
    %v1189 = vmul.f32 %v1181, %v419
    %v1190 = vadd.f32 %v1172, %v1182
    %v1191 = vadd.f32 %v1173, %v1183
    %v1192 = vadd.f32 %v1174, %v1184
    %v1193 = vadd.f32 %v1175, %v1185
    %v1194 = vadd.f32 %v1176, %v1186
    %v1195 = vadd.f32 %v1177, %v1187
    %v1196 = vadd.f32 %v1178, %v1188
    %v1197 = vadd.f32 %v1179, %v1189
    %s1198 = sld [smem:[#allocation7 + $0x1a]]
    %v1199 = vstv %s1198
    %v1200 = vmul.f32 %v1199, %v453
    %v1201 = vmul.f32 %v1199, %v454
    %v1202 = vmul.f32 %v1199, %v455
    %v1203 = vmul.f32 %v1199, %v456
    %v1204 = vmul.f32 %v1199, %v457
    %v1205 = vmul.f32 %v1199, %v458
    %v1206 = vmul.f32 %v1199, %v459
    %v1207 = vmul.f32 %v1199, %v460
    %v1208 = vadd.f32 %v1190, %v1200
    %v1209 = vadd.f32 %v1191, %v1201
    %v1210 = vadd.f32 %v1192, %v1202
    %v1211 = vadd.f32 %v1193, %v1203
    %v1212 = vadd.f32 %v1194, %v1204
    %v1213 = vadd.f32 %v1195, %v1205
    %v1214 = vadd.f32 %v1196, %v1206
    %v1215 = vadd.f32 %v1197, %v1207
    %s1216 = sld [smem:[#allocation8 + $0x2]]
    %v1217 = vstv %s1216
    %v1218 = vadd.f32 %v1208, %v1217
    %v1219 = vadd.f32 %v1209, %v1217
    %v1220 = vadd.f32 %v1210, %v1217
    %v1221 = vadd.f32 %v1211, %v1217
    %v1222 = vadd.f32 %v1212, %v1217
    %v1223 = vadd.f32 %v1213, %v1217
    %v1224 = vadd.f32 %v1214, %v1217
    %v1225 = vadd.f32 %v1215, %v1217
    %v1234 = vcombine.low %v1218, %v1219
    %v1235 = vcombine.low %v1220, %v1221
    %v1236 = vcombine.low %v1222, %v1223
    %v1237 = vcombine.low %v1224, %v1225
    %v1239 = vunpack.c.l.s4 1966171168
    %v1240 = vunpack.c.0.s8 %v1239
    %v1241 = vlaneseq
    %v1242 = vshrl.u32 %v1241, 7
    %v1243 = vsub.s32 %v1240, %v1242
    %v1244 = vrot.slane %v1234, %v1243
    %v1246 = vunpack.c.l.s4 1966171168
    %v1247 = vunpack.c.0.s8 %v1246
    %v1248 = vlaneseq
    %v1249 = vshrl.u32 %v1248, 7
    %v1250 = vsub.s32 %v1247, %v1249
    %v1251 = vrot.slane %v1235, %v1250
    %v1253 = vunpack.c.l.s4 1966171168
    %v1254 = vunpack.c.0.s8 %v1253
    %v1255 = vlaneseq
    %v1256 = vshrl.u32 %v1255, 7
    %v1257 = vsub.s32 %v1254, %v1256
    %v1258 = vrot.slane %v1236, %v1257
    %v1260 = vunpack.c.l.s4 1966171168
    %v1261 = vunpack.c.0.s8 %v1260
    %v1262 = vlaneseq
    %v1263 = vshrl.u32 %v1262, 7
    %v1264 = vsub.s32 %v1261, %v1263
    %v1265 = vrot.slane %v1237, %v1264
    %v1266 = vcombine.low %v1244, %v1251
    %v1267 = vcombine.high %v1244, %v1251
    %v1268 = vcombine.low %v1258, %v1265
    %v1269 = vcombine.high %v1258, %v1265
    %v1271 = vunpack.c.l.s4 1966171168
    %v1272 = vunpack.c.0.s8 %v1271
    %v1273 = vlaneseq
    %v1274 = vshrl.u32 %v1273, 7
    %v1275 = vsub.s32 %v1272, %v1274
    %v1276 = vrot.slane %v1266, %v1275
    %v1278 = vunpack.c.l.s4 1966171168
    %v1279 = vunpack.c.0.s8 %v1278
    %v1280 = vlaneseq
    %v1281 = vshrl.u32 %v1280, 7
    %v1282 = vsub.s32 %v1279, %v1281
    %v1283 = vrot.slane %v1267, %v1282
    %v1285 = vunpack.c.l.s4 1966171168
    %v1286 = vunpack.c.0.s8 %v1285
    %v1287 = vlaneseq
    %v1288 = vshrl.u32 %v1287, 7
    %v1289 = vsub.s32 %v1286, %v1288
    %v1290 = vrot.slane %v1268, %v1289
    %v1292 = vunpack.c.l.s4 1966171168
    %v1293 = vunpack.c.0.s8 %v1292
    %v1294 = vlaneseq
    %v1295 = vshrl.u32 %v1294, 7
    %v1296 = vsub.s32 %v1293, %v1295
    %v1297 = vrot.slane %v1269, %v1296
    %v1298 = vcombine.low %v1276, %v1290
    %v1299 = vcombine.low %v1283, %v1297
    %s1302 = scalar_lea.vmem %s4, 2
    %1303 = vst [vmem:[%s1302] ss:$4 sm:$0xff] %v1298
    %s1304 = scalar_lea.vmem %s4, 34
    %1305 = vst [vmem:[%s1304] ss:$4 sm:$0xff] %v1299
    // Predicated region
    $region34: #{tpu_custom_call.1} parent=1 // pred_check
      _
    $region35: #{tpu_custom_call.1} parent=1 // pred_check_branch
      %1307 = sbr.rel (0) target = $region37
    $region36: #{tpu_custom_call.1} parent=1 // pred_region
      _
    $region37: #{tpu_custom_call.1} parent=1 // pred_fallthru
      _
    // Predicated region
    $region38: #{tpu_custom_call.1} parent=1 // pred_check
      _
    $region39: #{tpu_custom_call.1} parent=1 // pred_check_branch
      %1309 = sbr.rel (0) target = $region41
    $region40: #{tpu_custom_call.1} parent=1 // pred_region
      _
    $region41: #{tpu_custom_call.1} parent=1 // pred_fallthru
      _
    %1310 = vsyncpa [#allocation3], 1
    %1311 = vsyncpa [#allocation6], 1
    %1312 = vsyncpa [#allocation4], 1
    %1313 = vsyncpa [#allocation9], 1

</llo_original>
